<compile_context>
chip_gen: v5e
topology: v5e:2x2
jax: 0.10.0
libtpu: 0.0.40
codegen_flags: <defaults>
</compile_context>

<pallas_src>
import functools

import jax
import jax.numpy as jnp
from jax.experimental import pallas as pl
from jax.experimental.pallas import tpu as pltpu


_NEG_SLOPE = 0.01
_LANE = 128


def _round_up(x, m):
    return ((x + m - 1) // m) * m


def _pad_to(a, shape):
    pads = tuple((0, t - s) for s, t in zip(a.shape, shape))
    if all(p == (0, 0) for p in pads):
        return a
    return jnp.pad(a, pads)


def _vmem_limit_bytes():
    """Scoped-VMEM request, generation-aware with a safe fallback."""
    cap = 128 * 1024 * 1024
    try:
        info = pltpu.get_tpu_info()
        cap = int(getattr(info, "vmem_capacity_bytes", cap))
    except Exception:
        pass
    # 64 MiB on v5e/v6e (128 MiB physical VMEM); 48 MiB on v7x (64 MiB / TC).
    return min(64 * 1024 * 1024, (cap * 3) // 4)


def _mlp_kernel(x_ref, w1_ref, b1_ref, w2_ref, b2_ref, o_ref, *,
                apply_softmax, approx_softmax, compute_dtype):
    # x_ref:  (block_b, input_dim)   f32 (cast to compute_dtype in-kernel)
    # w1_ref: (input_dim, H_pad)     compute_dtype;  b1_ref: (1, H_pad)      f32
    # w2_ref: (H_pad, output_dim)    compute_dtype;  b2_ref: (1, output_dim) f32
    # o_ref:  (block_b, output_dim)  out_dtype
    x = x_ref[...]
    if x.dtype != compute_dtype:
        x = x.astype(compute_dtype)

    # fc1 + leaky_relu (MXU matmul, f32 accumulation; epilogue stays f32)
    h = jnp.dot(x, w1_ref[...], preferred_element_type=jnp.float32)
    h = h + b1_ref[...]
    h = jnp.maximum(h, _NEG_SLOPE * h)          # leaky_relu: 1 mul + 1 max

    # fc2 + leaky_relu
    if h.dtype != w2_ref.dtype:
        h = h.astype(w2_ref.dtype)
    y = jnp.dot(h, w2_ref[...], preferred_element_type=jnp.float32)
    y = y + b2_ref[...]
    y = jnp.maximum(y, _NEG_SLOPE * y)

    if apply_softmax:
        # Output dim is unpadded, so no column mask is needed.
        m = jnp.max(y, axis=-1, keepdims=True)
        e = jnp.exp(y - m)
        denom = jnp.sum(e, axis=-1, keepdims=True)
        if approx_softmax:
            y = e * pl.reciprocal(denom, approx=True)   # EUP slot, no VPU divide
        else:
            y = e / denom                               # exact parity path

    o_ref[...] = y.astype(o_ref.dtype)


def neural_net_forward(x, w1, b1, w2, b2, *, apply_softmax=False,
                       block_b=2048, approx_softmax=True,
                       compute_dtype=jnp.bfloat16, out_dtype=jnp.float32):
    """Pallas forward pass of NeuralNet.

    x:  (B, input_dim) float32
    w1: (input_dim, hidden_dim)  b1: (hidden_dim,)   (weights pre-transposed
    w2: (hidden_dim, output_dim) b2: (output_dim,)    vs. torch's (out, in))
    """
    B, input_dim = x.shape
    hidden_dim = w1.shape[1]
    output_dim = w2.shape[1]
    assert w1.shape == (input_dim, hidden_dim)
    assert w2.shape == (hidden_dim, output_dim)

    # Pad only the weight-internal hidden dim to full lanes; padded rows/cols
    # are zero so the math is unchanged.  Input/output dims stay native so the
    # x read and output write HBM streams are not inflated.
    H = _round_up(hidden_dim, _LANE)

    w_item = jnp.dtype(compute_dtype).itemsize
    out_item = jnp.dtype(out_dtype).itemsize

    # --- batch-tile selection --------------------------------------------
    b_ceil = _round_up(B, 16)                    # 16: safe sublane multiple
    block_b = _round_up(max(16, min(int(block_b), b_ceil)), 16)

    # Keep >= 2 grid steps on large batches so v7x's second TensorCore
    # (megacore "parallel" sharding) always has work.
    if b_ceil >= 1024:
        block_b = min(block_b, _round_up((b_ceil + 1) // 2, 16))

    # Honest per-core VMEM footprint: double-buffered x/out tiles,
    # double-buffered resident weights, f32 intermediate h (+ low-precision
    # copy of x/h for the MXU) and softmax temporaries.
    weight_bytes = 2 * ((input_dim * H + H * output_dim) * w_item
                        + (H + output_dim) * 4)

    def _footprint(bb):
        x_tiles = 2 * bb * input_dim * 4                       # f32 x tiles
        o_tiles = 2 * bb * output_dim * out_item
        h_bytes = bb * H * 4                                   # f32 intermediate
        lo_bytes = bb * (H + input_dim) * w_item if w_item != 4 else 0
        epilogue = 3 * bb * output_dim * 4                     # y / exp / temps
        return x_tiles + o_tiles + h_bytes + lo_bytes + epilogue + weight_bytes

    vmem_limit = _vmem_limit_bytes()
    budget = max(4 * 1024 * 1024, vmem_limit - 8 * 1024 * 1024)
    while block_b > 16 and _footprint(block_b) > budget:
        block_b = _round_up(block_b // 2, 16)

    B_pad = _round_up(B, block_b)

    xp = _pad_to(x, (B_pad, input_dim))                         # batch pad only
    w1p = _pad_to(w1.astype(compute_dtype), (input_dim, H))
    w2p = _pad_to(w2.astype(compute_dtype), (H, output_dim))
    b1p = _pad_to(b1.astype(jnp.float32).reshape(1, -1), (1, H))
    b2p = b2.astype(jnp.float32).reshape(1, -1)

    kernel = functools.partial(_mlp_kernel,
                               apply_softmax=apply_softmax,
                               approx_softmax=approx_softmax,
                               compute_dtype=compute_dtype)

    def _const_spec(shape):
        # Grid-invariant operands: constant index_map, default buffering
        # (counted 2x in the footprint above).
        return pl.BlockSpec(shape, lambda i: (0, 0))

    out = pl.pallas_call(
        kernel,
        out_shape=jax.ShapeDtypeStruct((B_pad, output_dim), out_dtype),
        grid_spec=pltpu.PrefetchScalarGridSpec(
            num_scalar_prefetch=0,
            grid=(B_pad // block_b,),
            in_specs=[
                pl.BlockSpec((block_b, input_dim), lambda i: (i, 0)),
                _const_spec((input_dim, H)),
                _const_spec((1, H)),
                _const_spec((H, output_dim)),
                _const_spec((1, output_dim)),
            ],
            out_specs=pl.BlockSpec((block_b, output_dim), lambda i: (i, 0)),
        ),
        compiler_params=pltpu.CompilerParams(
            dimension_semantics=("parallel",),
            vmem_limit_bytes=vmem_limit,
        ),
    )(xp, w1p, b1p, w2p, b2p)

    return out if B_pad == B else out[:B]


def _reference_forward(x, w1, b1, w2, b2, apply_softmax=False,
                       compute_dtype=jnp.bfloat16):
    """Pure-JAX reference with the same bf16-operand / f32-accumulate recipe."""
    cd = compute_dtype
    h = jnp.dot(x.astype(cd), w1.astype(cd),
                preferred_element_type=jnp.float32) + b1
    h = jnp.maximum(h, _NEG_SLOPE * h)
    y = jnp.dot(h.astype(cd), w2.astype(cd),
                preferred_element_type=jnp.float32) + b2
    y = jnp.maximum(y, _NEG_SLOPE * y)
    if apply_softmax:
        y = jax.nn.softmax(y, axis=1)
    return y


if __name__ == "__main__":
    # Small shapes consistent with NeuralNet(input_dim, hidden_dim, output_dim)
    batch, input_dim, hidden_dim, output_dim = 8, 32, 64, 16

    key = jax.random.PRNGKey(0)
    kx, kw1, kb1, kw2, kb2 = jax.random.split(key, 5)

    x = jax.random.normal(kx, (batch, input_dim), dtype=jnp.float32)
    w1 = jax.random.normal(kw1, (input_dim, hidden_dim), dtype=jnp.float32) * (
        (2.0 / (input_dim + hidden_dim)) ** 0.5)
    b1 = jax.random.normal(kb1, (hidden_dim,), dtype=jnp.float32) * 0.01
    w2 = jax.random.normal(kw2, (hidden_dim, output_dim), dtype=jnp.float32) * (
        (2.0 / (hidden_dim + output_dim)) ** 0.5)
    b2 = jax.random.normal(kb2, (output_dim,), dtype=jnp.float32) * 0.01

    # --- single-tile path (small batch) ---
    y = jax.block_until_ready(
        neural_net_forward(x, w1, b1, w2, b2, apply_softmax=False))
    y_sm = jax.block_until_ready(
        neural_net_forward(x, w1, b1, w2, b2, apply_softmax=True))

    y_ref = _reference_forward(x, w1, b1, w2, b2, apply_softmax=False)
    y_sm_ref = _reference_forward(x, w1, b1, w2, b2, apply_softmax=True)

    assert y.shape == (batch, output_dim)
    assert jnp.allclose(y, y_ref, atol=5e-3, rtol=2e-2), float(
        jnp.max(jnp.abs(y - y_ref)))
    assert jnp.allclose(y_sm, y_sm_ref, atol=5e-3, rtol=2e-2), float(
        jnp.max(jnp.abs(y_sm - y_sm_ref)))
    assert jnp.allclose(jnp.sum(y_sm, axis=1), 1.0, atol=5e-3)

    # --- multi-step grid path (exercises pipelining / megacore sharding) ---
    xb = jax.random.normal(kx, (48, input_dim), dtype=jnp.float32)
    yb = jax.block_until_ready(
        neural_net_forward(xb, w1, b1, w2, b2, apply_softmax=True, block_b=16))
    yb_ref = _reference_forward(xb, w1, b1, w2, b2, apply_softmax=True)
    assert yb.shape == (48, output_dim)
    assert jnp.allclose(yb, yb_ref, atol=5e-3, rtol=2e-2), float(
        jnp.max(jnp.abs(yb - yb_ref)))

    # --- bf16 output path (halves output writeback) ---
    yb16 = jax.block_until_ready(
        neural_net_forward(xb, w1, b1, w2, b2, apply_softmax=False,
                           out_dtype=jnp.bfloat16))
    assert yb16.dtype == jnp.bfloat16 and yb16.shape == (48, output_dim)
    yb16_ref = _reference_forward(xb, w1, b1, w2, b2, apply_softmax=False)
    assert jnp.allclose(yb16.astype(jnp.float32), yb16_ref,
                        atol=3e-2, rtol=5e-2), float(
        jnp.max(jnp.abs(yb16.astype(jnp.float32) - yb16_ref)))

    print("KERNEL_OK")
</pallas_src>

<mosaic_0001>
module attributes {stable_mosaic.version = 11 : i64} {
  func.func @_mlp_kernel(%arg0: i32, %arg1: memref<16x32xf32, #tpu.memory_space<vmem>>, %arg2: memref<32x128xbf16, #tpu.memory_space<vmem>>, %arg3: memref<1x128xf32, #tpu.memory_space<vmem>>, %arg4: memref<128x16xbf16, #tpu.memory_space<vmem>>, %arg5: memref<1x16xf32, #tpu.memory_space<vmem>>, %arg6: memref<16x16xf32, #tpu.memory_space<vmem>>) attributes {dimension_semantics = [#tpu.dimension_semantics<parallel>], iteration_bounds = array<i64: 1>, scalar_prefetch = 0 : i64, scratch_operands = 0 : i64, tpu.core_type = #tpu.core_type<tc>, window_params = [{transform_indices = @transform_0, window_bounds = array<i64: 16, 32>}, {pipeline_mode = #tpu.pipeline_mode<synchronous>, transform_indices = @transform_1, window_bounds = array<i64: 32, 128>}, {pipeline_mode = #tpu.pipeline_mode<synchronous>, transform_indices = @transform_2, window_bounds = array<i64: 1, 128>}, {pipeline_mode = #tpu.pipeline_mode<synchronous>, transform_indices = @transform_3, window_bounds = array<i64: 128, 16>}, {pipeline_mode = #tpu.pipeline_mode<synchronous>, transform_indices = @transform_4, window_bounds = array<i64: 1, 16>}, {transform_indices = @transform_5, window_bounds = array<i64: 16, 16>}]} {
    %c0 = arith.constant 0 : index
    %c0_0 = arith.constant 0 : index
    %0 = vector.load %arg1[%c0, %c0_0] : memref<16x32xf32, #tpu.memory_space<vmem>>, vector<16x32xf32>
    %1 = arith.truncf %0 : vector<16x32xf32> to vector<16x32xbf16>
    %c0_1 = arith.constant 0 : index
    %c0_2 = arith.constant 0 : index
    %2 = vector.load %arg2[%c0_1, %c0_2] : memref<32x128xbf16, #tpu.memory_space<vmem>>, vector<32x128xbf16>
    %cst = arith.constant dense<0.000000e+00> : vector<16x128xf32>
    %3 = tpu.matmul %1, %2, %cst {dimension_numbers = #tpu.dot_dimension_numbers<[1], [0], [0], [1], [0, 0, 1, 1], [], []>} : vector<16x32xbf16>, vector<32x128xbf16>, vector<16x128xf32> -> vector<16x128xf32>
    %c0_3 = arith.constant 0 : index
    %c0_4 = arith.constant 0 : index
    %4 = vector.load %arg3[%c0_3, %c0_4] : memref<1x128xf32, #tpu.memory_space<vmem>>, vector<1x128xf32>
    %5 = vector.broadcast %4 : vector<1x128xf32> to vector<16x128xf32>
    %6 = arith.addf %3, %5 : vector<16x128xf32>
    %cst_5 = arith.constant 0.00999999977 : f32
    %7 = vector.broadcast %cst_5 : f32 to vector<16x128xf32>
    %8 = arith.mulf %7, %6 : vector<16x128xf32>
    %9 = arith.maximumf %6, %8 : vector<16x128xf32>
    %10 = arith.truncf %9 : vector<16x128xf32> to vector<16x128xbf16>
    %c0_6 = arith.constant 0 : index
    %c0_7 = arith.constant 0 : index
    %11 = vector.load %arg4[%c0_6, %c0_7] : memref<128x16xbf16, #tpu.memory_space<vmem>>, vector<128x16xbf16>
    %cst_8 = arith.constant dense<0.000000e+00> : vector<16x16xf32>
    %12 = tpu.matmul %10, %11, %cst_8 {dimension_numbers = #tpu.dot_dimension_numbers<[1], [0], [0], [1], [0, 0, 1, 1], [], []>} : vector<16x128xbf16>, vector<128x16xbf16>, vector<16x16xf32> -> vector<16x16xf32>
    %c0_9 = arith.constant 0 : index
    %c0_10 = arith.constant 0 : index
    %13 = vector.load %arg5[%c0_9, %c0_10] : memref<1x16xf32, #tpu.memory_space<vmem>>, vector<1x16xf32>
    %14 = vector.broadcast %13 : vector<1x16xf32> to vector<16x16xf32>
    %15 = arith.addf %12, %14 : vector<16x16xf32>
    %cst_11 = arith.constant 0.00999999977 : f32
    %16 = vector.broadcast %cst_11 : f32 to vector<16x16xf32>
    %17 = arith.mulf %16, %15 : vector<16x16xf32>
    %18 = arith.maximumf %15, %17 : vector<16x16xf32>
    %c0_12 = arith.constant 0 : index
    %c0_13 = arith.constant 0 : index
    %19 = vector.load %arg6[%c0_12, %c0_13] : memref<16x16xf32, #tpu.memory_space<vmem>>, vector<16x16xf32>
    tpu.vector_store %arg6[%c0_12, %c0_13], %18 {strides = array<i32>} : memref<16x16xf32, #tpu.memory_space<vmem>>, vector<16x16xf32>,
    return
  }
  func.func @transform_0(%arg0: i32) -> (i32, i32) {
    %c0_i32 = arith.constant 0 : i32
    %c0_i32_0 = arith.constant 0 : i32
    return %arg0, %c0_i32 : i32, i32
  }
  func.func @transform_1(%arg0: i32) -> (i32, i32) {
    %c0_i32 = arith.constant 0 : i32
    %c0_i32_0 = arith.constant 0 : i32
    %c0_i32_1 = arith.constant 0 : i32
    return %c0_i32, %c0_i32_0 : i32, i32
  }
  func.func @transform_2(%arg0: i32) -> (i32, i32) {
    %c0_i32 = arith.constant 0 : i32
    %c0_i32_0 = arith.constant 0 : i32
    %c0_i32_1 = arith.constant 0 : i32
    return %c0_i32, %c0_i32_0 : i32, i32
  }
  func.func @transform_3(%arg0: i32) -> (i32, i32) {
    %c0_i32 = arith.constant 0 : i32
    %c0_i32_0 = arith.constant 0 : i32
    %c0_i32_1 = arith.constant 0 : i32
    return %c0_i32, %c0_i32_0 : i32, i32
  }
  func.func @transform_4(%arg0: i32) -> (i32, i32) {
    %c0_i32 = arith.constant 0 : i32
    %c0_i32_0 = arith.constant 0 : i32
    %c0_i32_1 = arith.constant 0 : i32
    return %c0_i32, %c0_i32_0 : i32, i32
  }
  func.func @transform_5(%arg0: i32) -> (i32, i32) {
    %c0_i32 = arith.constant 0 : i32
    %c0_i32_0 = arith.constant 0 : i32
    return %arg0, %c0_i32 : i32, i32
  }
}

</mosaic_0001>

<llo_original>
// kernel: tpu_custom_call.1
$region0: #{tpu_custom_call.1}
  #allocation0 [shape = 'u32[]', space=smem, size = 0x4, offset = 0x4, fixed_abs, tag = 'smem constant byte address 0x4 - core index']
  #allocation1 [shape = 'u32[72,128]{1,0:T(1,128)}', space=vmem, size = 0x9000, scoped, tag = 'internal scratch']
  %s0 = inlined_call_operand.vmem [shape: f32[16,32], index: 0, kind: input, shape index: {}]
  %s1 = inlined_call_operand.vmem [shape: bf16[32,128], index: 1, kind: input, shape index: {}]
  %s2 = inlined_call_operand.vmem [shape: f32[1,128], index: 2, kind: input, shape index: {}]
  %s3 = inlined_call_operand.vmem [shape: bf16[128,16], index: 3, kind: input, shape index: {}]
  %s4 = inlined_call_operand.vmem [shape: f32[1,16], index: 4, kind: input, shape index: {}]
  %s5 = inlined_call_operand.hbm [shape: f32[16,16], index: 5, kind: output, shape index: {}]
  %s6 = sld [smem:[#allocation0]]
  $region30: #{tpu_custom_call.1} parent=0
    _
  %s8 = ssub.s32 1, %s6
  %s9 = scalar_select 0, %s8, %s6
  $region1: #{tpu_custom_call.1} parent=0
    #allocation2 [shape = 'u8[8192]{0}', space=vmem, size = 0x2000, scoped, tag = 'output window, operand 0, single buffered']
    #allocation3 [shape = 's32[1]{0}', space=sflag, size = 0x4, scoped, tag = 'scoped memory for tpu_custom_call.1']
    %10 = vsyncpa [#allocation3], 0
    // Predicated region
    $region2: #{tpu_custom_call.1} parent=1 // pred_check
      _
    $region3: #{tpu_custom_call.1} parent=1 // pred_check_branch
      %12 = sbr.rel (0) target = $region5
    $region4: #{tpu_custom_call.1} parent=1 // pred_region
      _
    $region5: #{tpu_custom_call.1} parent=1 // pred_fallthru
      _
    // Predicated region
    $region6: #{tpu_custom_call.1} parent=1 // pred_check
      _
    $region7: #{tpu_custom_call.1} parent=1 // pred_check_branch
      %14 = sbr.rel (0) target = $region9
    $region8: #{tpu_custom_call.1} parent=1 // pred_region
      _
    $region9: #{tpu_custom_call.1} parent=1 // pred_fallthru
      _
    // Predicated region
    $region10: #{tpu_custom_call.1} parent=1 // pred_check
      _
    $region11: #{tpu_custom_call.1} parent=1 // pred_check_branch
      %16 = sbr.rel (0) target = $region13
    $region12: #{tpu_custom_call.1} parent=1 // pred_region
      _
    $region13: #{tpu_custom_call.1} parent=1 // pred_fallthru
      _
    // Predicated region
    $region14: #{tpu_custom_call.1} parent=1 // pred_check
      _
    $region15: #{tpu_custom_call.1} parent=1 // pred_check_branch
      %18 = sbr.rel (0) target = $region17
    $region16: #{tpu_custom_call.1} parent=1 // pred_region
      _
    $region17: #{tpu_custom_call.1} parent=1 // pred_fallthru
      _
    // Predicated region
    $region18: #{tpu_custom_call.1} parent=1 // pred_check
      _
    $region19: #{tpu_custom_call.1} parent=1 // pred_check_branch
      %20 = sbr.rel (0) target = $region21
    $region20: #{tpu_custom_call.1} parent=1 // pred_region
      _
    $region21: #{tpu_custom_call.1} parent=1 // pred_fallthru
      _
    %v22 = vld [vmem:[%s0] sm:$0xff]
    %v23 = vld [vmem:[%s0 + $0x8] sm:$0xff]
    %v24 = vpack.c.bf16 %v23, %v22
    %v25 = vld [vmem:[%s1] sm:$0xf]
    %v26 = vld [vmem:[%s1 + $0x4] sm:$0xf]
    %v27 = vld [vmem:[%s1 + $0x8] sm:$0xf]
    %v28 = vld [vmem:[%s1 + $0xc] sm:$0xf]
    %v29 = vld [vmem:[%s2] sm:$0x1]
    %v31 = vperm.slane %v29, 0
    %v37 = vunpack.c.l.b16 %v25
    %v38 = vunpack.c.l.b16 %v26
    %v39 = vunpack.c.l.b16 %v27
    %v40 = vunpack.c.l.b16 %v28
    %v41 = vpack.c.b16 %v38, %v37
    %v42 = vpack.c.b16 %v40, %v39
    %vm45 = vcmask 261120
    %v47 = vsel %vm45, %v24, 0
    %49 = vmatpush.bf16.msra.mxu0 0
    %50 = vmatpush.bf16.msra.mxu0 0
    %51 = vmatpush.bf16.msra.mxu0 0
    %52 = vmatpush.bf16.msra.mxu0 0
    %53 = vmatpush.bf16.msra.mxu0 0
    %54 = vmatpush.bf16.msra.mxu0 0
    %55 = vmatpush.bf16.msra.mxu0 %v42
    %56 = vmatpush.bf16.msra.mxu0 %v41
    %57 = vmatmul.bf16.gmra.mxu0 %v47
    %v58 = vpop.f32.mrf.mxu0
    %v59 = vadd.f32 %v31, %v58
    %v60 = vpop.f32.mrf.mxu0
    %v61 = vadd.f32 %v31, %v60
    %62 = vdwg.mxu0
    %v63 = vmul.f32 %v59, 0.01
    %v64 = vmul.f32 %v61, 0.01
    %v65 = vmax.f32 %v59, %v63
    %v66 = vmax.f32 %v61, %v64
    %v67 = vpack.c.bf16 %v66, %v65
    %v68 = vld [vmem:[%s3] sm:$0xf]
    %v69 = vld [vmem:[%s3 + $0x4] sm:$0xf]
    %v70 = vld [vmem:[%s3 + $0x8] sm:$0xf]
    %v71 = vld [vmem:[%s3 + $0xc] sm:$0xf]
    %v72 = vld [vmem:[%s3 + $0x10] sm:$0xf]
    %v73 = vld [vmem:[%s3 + $0x14] sm:$0xf]
    %v74 = vld [vmem:[%s3 + $0x18] sm:$0xf]
    %v75 = vld [vmem:[%s3 + $0x1c] sm:$0xf]
    %v76 = vld [vmem:[%s3 + $0x20] sm:$0xf]
    %v77 = vld [vmem:[%s3 + $0x24] sm:$0xf]
    %v78 = vld [vmem:[%s3 + $0x28] sm:$0xf]
    %v79 = vld [vmem:[%s3 + $0x2c] sm:$0xf]
    %v80 = vld [vmem:[%s3 + $0x30] sm:$0xf]
    %v81 = vld [vmem:[%s3 + $0x34] sm:$0xf]
    %v82 = vld [vmem:[%s3 + $0x38] sm:$0xf]
    %v83 = vld [vmem:[%s3 + $0x3c] sm:$0xf]
    %v84 = vld [vmem:[%s4] sm:$0x1]
    %v86 = vperm.slane %v84, 0
    %v104 = vunpack.c.l.b16 %v68
    %v105 = vunpack.c.l.b16 %v69
    %v106 = vunpack.c.l.b16 %v70
    %v107 = vunpack.c.l.b16 %v71
    %v108 = vunpack.c.l.b16 %v72
    %v109 = vunpack.c.l.b16 %v73
    %v110 = vunpack.c.l.b16 %v74
    %v111 = vunpack.c.l.b16 %v75
    %v112 = vunpack.c.l.b16 %v76
    %v113 = vunpack.c.l.b16 %v77
    %v114 = vunpack.c.l.b16 %v78
    %v115 = vunpack.c.l.b16 %v79
    %v116 = vunpack.c.l.b16 %v80
    %v117 = vunpack.c.l.b16 %v81
    %v118 = vunpack.c.l.b16 %v82
    %v119 = vunpack.c.l.b16 %v83
    %v120 = vpack.c.b16 %v105, %v104
    %v121 = vpack.c.b16 %v107, %v106
    %v122 = vpack.c.b16 %v109, %v108
    %v123 = vpack.c.b16 %v111, %v110
    %v124 = vpack.c.b16 %v113, %v112
    %v125 = vpack.c.b16 %v115, %v114
    %v126 = vpack.c.b16 %v117, %v116
    %v127 = vpack.c.b16 %v119, %v118
    %136 = vmatpush.bf16.msra.mxu0 %v127
    %137 = vmatpush.bf16.msra.mxu0 %v126
    %138 = vmatpush.bf16.msra.mxu0 %v125
    %139 = vmatpush.bf16.msra.mxu0 %v124
    %140 = vmatpush.bf16.msra.mxu0 %v123
    %141 = vmatpush.bf16.msra.mxu0 %v122
    %142 = vmatpush.bf16.msra.mxu0 %v121
    %143 = vmatpush.bf16.msra.mxu0 %v120
    %144 = vmatmul.bf16.gmra.mxu0 %v67
    %v145 = vpop.f32.mrf.mxu0
    %v146 = vadd.f32 %v86, %v145
    %v147 = vpop.f32.mrf.mxu0
    %v148 = vadd.f32 %v86, %v147
    %149 = vdwg.mxu0
    %v150 = vmul.f32 %v146, 0.01
    %v151 = vmul.f32 %v148, 0.01
    %v152 = vmax.f32 %v146, %v150
    %v153 = vmax.f32 %v148, %v151
    %vm154 = vcmask 130048
    %155 = vst.msk [vmem:[#allocation2] sm:$0xff] %vm154, %v152
    %156 = vst.msk [vmem:[#allocation2 + $0x8] sm:$0xff] %vm154, %v153
    // Predicated region
    $region22: #{tpu_custom_call.1} parent=1 // pred_check
      _
    $region23: #{tpu_custom_call.1} parent=1 // pred_check_branch
      %158 = sbr.rel (0) target = $region25
    $region24: #{tpu_custom_call.1} parent=1 // pred_region
      %160 = vsyncadd [#allocation3], 0
      %s161 = sshll.u32 [#allocation2], 4
      %s162 = int_to_ptr.vmem [resolvable:$true] %s161
      %s163 = sshll.u32 %s5, 4
      %s164 = int_to_ptr.hbm [resolvable:$true] %s163
      %169 = dma.vmem_to_hbm [thread:$0]  %s162, 256, %s164, [#allocation3], 128, 128, 8
    $region25: #{tpu_custom_call.1} parent=1 // pred_fallthru
      _
    // Predicated region
    $region26: #{tpu_custom_call.1} parent=1 // pred_check
      _
    $region27: #{tpu_custom_call.1} parent=1 // pred_check_branch
      %171 = sbr.rel (0) target = $region29
    $region28: #{tpu_custom_call.1} parent=1 // pred_region
      %173 = dma.done [#allocation3], 256
    $region29: #{tpu_custom_call.1} parent=1 // pred_fallthru
      _
    %174 = vsyncpa [#allocation3], 1

</llo_original>
